<compile_context>
chip_gen: v7x
topology: tpu7x:2x2x1
jax: 0.10.0
libtpu: 0.0.40
codegen_flags: <defaults>
</compile_context>

<pallas_src>
import functools

import jax
import jax.numpy as jnp
from jax.experimental import pallas as pl
from jax.experimental.pallas import tpu as pltpu


# ---------------------------------------------------------------------------
# Kernel: grid axis 0 = time *block* (TT steps per invocation).
#   inputs : x2d        [TT*B, U] bf16 (this block's inputs, time-major, flat)
#            g0,u0,v0   [B, U]    f32  initial state (read only on block 0)
#            w_rec,w_in [U, U]    bf16 resident transposed weights
#   outputs: g_seq,v_seq[TT*B, U] f32  per-step outputs for this block
#            u_final    [B, U]    f32  u carry (valid after the last block)
#   scratch: xproj      [TT*B, U] f32, g/u/v carries [B, U] f32
# ---------------------------------------------------------------------------
def _adaptation_block_kernel(x_ref, g0_ref, u0_ref, v0_ref, wrec_ref, win_ref,
                             g_out_ref, v_out_ref, u_fin_ref,
                             xproj_sc, g_sc, u_sc, v_sc,
                             *, alpha, beta, block_steps, batch, total_steps):
    blk = pl.program_id(0)

    # Load the initial state into the cross-block carries on the first block.
    @pl.when(blk == 0)
    def _():
        g_sc[...] = g0_ref[...].astype(jnp.float32)
        u_sc[...] = u0_ref[...].astype(jnp.float32)
        v_sc[...] = v0_ref[...].astype(jnp.float32)

    # Phase 0: hoisted input projection for the whole TT-step block as a single
    # MXU matmul with M = TT*B (fills the MXU far better than per-step M = B),
    # f32 accumulation into VMEM scratch.  Removes W_in from the recurrence.
    xproj_sc[...] = jnp.dot(x_ref[...], win_ref[...],
                            preferred_element_type=jnp.float32)

    # Only the last block can contain padded steps; gate the masking at
    # compile time so the common (T % TT == 0) path pays nothing.
    needs_mask = (total_steps % block_steps) != 0

    def step(i, carry):
        g_prev, u_prev, v_prev = carry
        off = pl.multiple_of(i * batch, batch)

        # Per-step recurrent matmul only: [B, U](bf16) @ [U, U](bf16) -> f32.
        rec = jnp.dot(g_prev.astype(jnp.bfloat16), wrec_ref[...],
                      preferred_element_type=jnp.float32)

        # Elementwise state update in f32 (VPU); tanh on the EUP.
        u = rec + xproj_sc[pl.ds(off, batch), :] - beta * v_prev
        v = v_prev + alpha * (u_prev - v_prev)   # previous step's u, per module
        g = jnp.tanh(u)

        # Per-step outputs (module's per-step output is [g, v]).
        g_out_ref[pl.ds(off, batch), :] = g.astype(g_out_ref.dtype)
        v_out_ref[pl.ds(off, batch), :] = v.astype(v_out_ref.dtype)

        if needs_mask:
            valid = (blk * block_steps + i) < total_steps
            g = jnp.where(valid, g, g_prev)
            u = jnp.where(valid, u, u_prev)
            v = jnp.where(valid, v, v_prev)
        return g, u, v

    # Unrolled sequential recurrence over the TT steps of this block; carries
    # live in vregs (no per-step scratch stores).
    g_fin, u_fin, v_fin = jax.lax.fori_loop(
        0, block_steps, step, (g_sc[...], u_sc[...], v_sc[...]), unroll=True)

    # Carry state to the next block; u is also the final-state output.
    g_sc[...] = g_fin
    u_sc[...] = u_fin
    v_sc[...] = v_fin
    u_fin_ref[...] = u_fin.astype(u_fin_ref.dtype)


# ---------------------------------------------------------------------------
# Wrappers
# ---------------------------------------------------------------------------
def prepare_weights(w_recurrent, w_input, dtype=jnp.bfloat16):
    """Hoisted one-time weight prep: PyTorch [out, in] -> [in, out], MXU dtype."""
    return (jnp.asarray(w_recurrent).T.astype(dtype),
            jnp.asarray(w_input).T.astype(dtype))


def adaptation_rnn_sequence(x_seq, states, w_rec_t, w_in_t, *, alpha, beta,
                            block_steps=32, out_dtype=jnp.float32):
    """Run T timesteps of the cell in one pallas_call.

    x_seq: [T, B, U]; states: (g0, u0, v0) each [B, U];
    w_rec_t / w_in_t: transposed [U, U] weights from prepare_weights().
    Returns (g_seq, v_seq, (g_T, u_T, v_T)) with g_seq/v_seq of shape [T, B, U].
    """
    T, B, U = x_seq.shape
    g0, u0, v0 = states

    tt = max(1, min(int(block_steps), T))
    num_blocks = pl.cdiv(T, tt)
    t_pad = num_blocks * tt

    # Hoisted casts / layout prep (outside the recurrence).
    x = x_seq.astype(jnp.bfloat16)
    if t_pad != T:
        x = jnp.pad(x, ((0, t_pad - T), (0, 0), (0, 0)))
    x2d = x.reshape(t_pad * B, U)                     # time-major, flat rows
    w_rec_bf16 = w_rec_t.astype(jnp.bfloat16)
    w_in_bf16 = w_in_t.astype(jnp.bfloat16)
    g0 = g0.astype(jnp.float32)
    u0 = u0.astype(jnp.float32)
    v0 = v0.astype(jnp.float32)

    kernel = functools.partial(
        _adaptation_block_kernel,
        alpha=float(alpha), beta=float(beta),
        block_steps=tt, batch=B, total_steps=T)

    seq_in_spec = pl.BlockSpec((tt * B, U), lambda b: (b, 0))
    state_spec = pl.BlockSpec((B, U), lambda b: (0, 0))
    w_spec = pl.BlockSpec((U, U), lambda b: (0, 0))
    seq_out_spec = pl.BlockSpec((tt * B, U), lambda b: (b, 0))
    fin_out_spec = pl.BlockSpec((B, U), lambda b: (0, 0))

    flops = 4 * T * B * U * U                       # recurrent + input matmuls
    transcendentals = T * B * U                     # tanh
    bytes_accessed = (x2d.size * 2                  # x (bf16)
                      + 2 * U * U * 2               # resident weights (bf16)
                      + 3 * B * U * 4               # initial state (f32)
                      + 2 * t_pad * B * U * 4       # g/v sequences (f32)
                      + B * U * 4)                  # final u (f32)

    g_flat, v_flat, u_fin = pl.pallas_call(
        kernel,
        grid=(num_blocks,),
        in_specs=[seq_in_spec, state_spec, state_spec, state_spec,
                  w_spec, w_spec],
        out_specs=(seq_out_spec, seq_out_spec, fin_out_spec),
        out_shape=(
            jax.ShapeDtypeStruct((t_pad * B, U), out_dtype),
            jax.ShapeDtypeStruct((t_pad * B, U), out_dtype),
            jax.ShapeDtypeStruct((B, U), out_dtype),
        ),
        scratch_shapes=[
            pltpu.VMEM((tt * B, U), jnp.float32),   # x @ W_in.T for this block
            pltpu.VMEM((B, U), jnp.float32),        # g carry
            pltpu.VMEM((B, U), jnp.float32),        # u carry
            pltpu.VMEM((B, U), jnp.float32),        # v carry
        ],
        compiler_params=pltpu.CompilerParams(
            dimension_semantics=("arbitrary",)),    # sequential recurrence
        cost_estimate=pl.CostEstimate(
            flops=flops,
            transcendentals=transcendentals,
            bytes_accessed=bytes_accessed),
    )(x2d, g0, u0, v0, w_rec_bf16, w_in_bf16)

    g_seq = g_flat.reshape(t_pad, B, U)[:T]
    v_seq = v_flat.reshape(t_pad, B, U)[:T]
    final_state = (g_seq[-1], u_fin, v_seq[-1])
    return g_seq, v_seq, final_state


def adaptation_rnn_cell(inputs, states, w_recurrent, w_input, *, alpha, beta):
    """Single-step forward matching the PyTorch module's `forward` exactly.

    inputs: [B, U]; states: (g_prev, u_prev, v_prev) each [B, U];
    w_recurrent / w_input: PyTorch-convention [out, in] bias-free weights.
    For sequence execution, call prepare_weights() once and use
    adaptation_rnn_sequence directly (avoids re-doing the weight prep).
    """
    w_rec_t, w_in_t = prepare_weights(w_recurrent, w_input)
    _, _, (g, u, v) = adaptation_rnn_sequence(
        inputs[None], states, w_rec_t, w_in_t,
        alpha=alpha, beta=beta, block_steps=1)
    return [g, v], [g, u, v]


# ---------------------------------------------------------------------------
# Reference (mirrors the kernel's MXU precision: bf16 operands, f32 accumulate)
# ---------------------------------------------------------------------------
def _reference_step(x, states, w_rec_t, w_in_t, *, alpha, beta):
    g_prev, u_prev, v_prev = states
    rec = jnp.dot(g_prev.astype(jnp.bfloat16), w_rec_t.astype(jnp.bfloat16),
                  preferred_element_type=jnp.float32)
    inp = jnp.dot(x.astype(jnp.bfloat16), w_in_t.astype(jnp.bfloat16),
                  preferred_element_type=jnp.float32)
    u = rec + inp - beta * v_prev
    v = v_prev + alpha * (u_prev - v_prev)
    g = jnp.tanh(u)
    return [g, v], [g, u, v]


if __name__ == "__main__":
    units = 128
    batch = 16          # multiple of 16 -> native bf16 sublane packing
    seq_len = 8
    alpha = 0.1
    beta = 0.5

    key = jax.random.PRNGKey(0)
    k_x, k_g, k_u, k_v, k_w, k_p = jax.random.split(key, 6)

    x_seq = jax.random.normal(k_x, (seq_len, batch, units), jnp.float32)
    g0 = jax.random.normal(k_g, (batch, units), jnp.float32)
    u0 = jax.random.normal(k_u, (batch, units), jnp.float32)
    v0 = jax.random.normal(k_v, (batch, units), jnp.float32)
    states = (g0, u0, v0)

    # Parameters: recurrent = eye_ init (plus a small perturbation so the test
    # exercises a non-trivial matmul), input_layer = nn.Linear default init.
    bound = 1.0 / (units ** 0.5)
    w_recurrent = (jnp.eye(units, dtype=jnp.float32)
                   + 0.05 * jax.random.normal(k_p, (units, units), jnp.float32))
    w_input = jax.random.uniform(k_w, (units, units), jnp.float32,
                                 minval=-bound, maxval=bound)

    # Hoisted once: transpose + bf16 cast.
    w_rec_t, w_in_t = prepare_weights(w_recurrent, w_input)

    # Step-by-step reference trajectory.
    ref_g, ref_u, ref_v = [], [], []
    st = list(states)
    for t in range(seq_len):
        _, st = _reference_step(x_seq[t], st, w_rec_t, w_in_t,
                                alpha=alpha, beta=beta)
        ref_g.append(st[0]); ref_u.append(st[1]); ref_v.append(st[2])

    # --- single-step cell: same signature/semantics as the PyTorch forward ---
    (g1, v1), (g_s, u_s, v_s) = adaptation_rnn_cell(
        x_seq[0], states, w_recurrent, w_input, alpha=alpha, beta=beta)
    jax.block_until_ready((g1, v1, g_s, u_s, v_s))
    (g_r, v_r), (_, u_r, _) = _reference_step(
        x_seq[0], states, w_rec_t, w_in_t, alpha=alpha, beta=beta)
    assert jnp.allclose(g1, g_r, atol=1e-2, rtol=1e-2)
    assert jnp.allclose(u_s, u_r, atol=1e-2, rtol=1e-2)
    assert jnp.allclose(v1, v_r, atol=1e-2, rtol=1e-2)

    # --- fused multi-step kernel, T % TT == 0 path (TT = 8) ---
    g_seq, v_seq, (g_T, u_T, v_T) = adaptation_rnn_sequence(
        x_seq, states, w_rec_t, w_in_t, alpha=alpha, beta=beta, block_steps=32)
    jax.block_until_ready((g_seq, v_seq, u_T))
    for t in range(seq_len):
        assert jnp.allclose(g_seq[t], ref_g[t], atol=3e-2, rtol=3e-2)
        assert jnp.allclose(v_seq[t], ref_v[t], atol=3e-2, rtol=3e-2)
    assert jnp.allclose(u_T, ref_u[-1], atol=3e-2, rtol=3e-2)

    # --- masked path: TT = 3 does not divide T = 8 (exercises padding/freeze) ---
    g_seq2, v_seq2, (_, u_T2, _) = adaptation_rnn_sequence(
        x_seq, states, w_rec_t, w_in_t, alpha=alpha, beta=beta, block_steps=3)
    jax.block_until_ready((g_seq2, v_seq2, u_T2))
    for t in range(seq_len):
        assert jnp.allclose(g_seq2[t], ref_g[t], atol=3e-2, rtol=3e-2)
        assert jnp.allclose(v_seq2[t], ref_v[t], atol=3e-2, rtol=3e-2)
    assert jnp.allclose(u_T2, ref_u[-1], atol=3e-2, rtol=3e-2)

    print("KERNEL_OK")
</pallas_src>

<mosaic_0001>
module attributes {stable_mosaic.version = 11 : i64} {
  func.func @_adaptation_block_kernel(%arg0: i32, %arg1: memref<16x128xbf16, #tpu.memory_space<vmem>>, %arg2: memref<16x128xf32, #tpu.memory_space<vmem>>, %arg3: memref<16x128xf32, #tpu.memory_space<vmem>>, %arg4: memref<16x128xf32, #tpu.memory_space<vmem>>, %arg5: memref<128x128xbf16, #tpu.memory_space<vmem>>, %arg6: memref<128x128xbf16, #tpu.memory_space<vmem>>, %arg7: memref<16x128xf32, #tpu.memory_space<vmem>>, %arg8: memref<16x128xf32, #tpu.memory_space<vmem>>, %arg9: memref<16x128xf32, #tpu.memory_space<vmem>>, %arg10: memref<16x128xf32, #tpu.memory_space<vmem>>, %arg11: memref<16x128xf32, #tpu.memory_space<vmem>>, %arg12: memref<16x128xf32, #tpu.memory_space<vmem>>, %arg13: memref<16x128xf32, #tpu.memory_space<vmem>>) attributes {dimension_semantics = [#tpu.dimension_semantics<arbitrary>], iteration_bounds = array<i64: 1>, scalar_prefetch = 0 : i64, scratch_operands = 4 : i64, tpu.core_type = #tpu.core_type<tc>, window_params = [{transform_indices = @transform_0, window_bounds = array<i64: 16, 128>}, {pipeline_mode = #tpu.pipeline_mode<synchronous>, transform_indices = @transform_1, window_bounds = array<i64: 16, 128>}, {pipeline_mode = #tpu.pipeline_mode<synchronous>, transform_indices = @transform_2, window_bounds = array<i64: 16, 128>}, {pipeline_mode = #tpu.pipeline_mode<synchronous>, transform_indices = @transform_3, window_bounds = array<i64: 16, 128>}, {pipeline_mode = #tpu.pipeline_mode<synchronous>, transform_indices = @transform_4, window_bounds = array<i64: 128, 128>}, {pipeline_mode = #tpu.pipeline_mode<synchronous>, transform_indices = @transform_5, window_bounds = array<i64: 128, 128>}, {transform_indices = @transform_6, window_bounds = array<i64: 16, 128>}, {transform_indices = @transform_7, window_bounds = array<i64: 16, 128>}, {pipeline_mode = #tpu.pipeline_mode<synchronous>, transform_indices = @transform_8, window_bounds = array<i64: 16, 128>}]} {
    %c0_i32 = arith.constant 0 : i32
    %0 = arith.cmpi eq, %arg0, %c0_i32 : i32
    %1 = arith.extui %0 : i1 to i32
    %c0_i32_0 = arith.constant 0 : i32
    %2 = arith.cmpi ne, %1, %c0_i32_0 : i32
    scf.if %2 {
      %c0_29 = arith.constant 0 : index
      %c0_30 = arith.constant 0 : index
      %34 = vector.load %arg2[%c0_29, %c0_30] : memref<16x128xf32, #tpu.memory_space<vmem>>, vector<16x128xf32>
      %c0_31 = arith.constant 0 : index
      %c0_32 = arith.constant 0 : index
      %35 = vector.load %arg11[%c0_31, %c0_32] : memref<16x128xf32, #tpu.memory_space<vmem>>, vector<16x128xf32>
      tpu.vector_store %arg11[%c0_31, %c0_32], %34 {strides = array<i32>} : memref<16x128xf32, #tpu.memory_space<vmem>>, vector<16x128xf32>,
      %c0_33 = arith.constant 0 : index
      %c0_34 = arith.constant 0 : index
      %36 = vector.load %arg3[%c0_33, %c0_34] : memref<16x128xf32, #tpu.memory_space<vmem>>, vector<16x128xf32>
      %c0_35 = arith.constant 0 : index
      %c0_36 = arith.constant 0 : index
      %37 = vector.load %arg12[%c0_35, %c0_36] : memref<16x128xf32, #tpu.memory_space<vmem>>, vector<16x128xf32>
      tpu.vector_store %arg12[%c0_35, %c0_36], %36 {strides = array<i32>} : memref<16x128xf32, #tpu.memory_space<vmem>>, vector<16x128xf32>,
      %c0_37 = arith.constant 0 : index
      %c0_38 = arith.constant 0 : index
      %38 = vector.load %arg4[%c0_37, %c0_38] : memref<16x128xf32, #tpu.memory_space<vmem>>, vector<16x128xf32>
      %c0_39 = arith.constant 0 : index
      %c0_40 = arith.constant 0 : index
      %39 = vector.load %arg13[%c0_39, %c0_40] : memref<16x128xf32, #tpu.memory_space<vmem>>, vector<16x128xf32>
      tpu.vector_store %arg13[%c0_39, %c0_40], %38 {strides = array<i32>} : memref<16x128xf32, #tpu.memory_space<vmem>>, vector<16x128xf32>,
    } else {
    }
    %c0 = arith.constant 0 : index
    %c0_1 = arith.constant 0 : index
    %3 = vector.load %arg1[%c0, %c0_1] : memref<16x128xbf16, #tpu.memory_space<vmem>>, vector<16x128xbf16>
    %c0_2 = arith.constant 0 : index
    %c0_3 = arith.constant 0 : index
    %4 = vector.load %arg6[%c0_2, %c0_3] : memref<128x128xbf16, #tpu.memory_space<vmem>>, vector<128x128xbf16>
    %cst = arith.constant dense<0.000000e+00> : vector<16x128xf32>
    %5 = tpu.matmul %3, %4, %cst {dimension_numbers = #tpu.dot_dimension_numbers<[1], [0], [0], [1], [0, 0, 1, 1], [], []>} : vector<16x128xbf16>, vector<128x128xbf16>, vector<16x128xf32> -> vector<16x128xf32>
    %c0_4 = arith.constant 0 : index
    %c0_5 = arith.constant 0 : index
    %6 = vector.load %arg10[%c0_4, %c0_5] : memref<16x128xf32, #tpu.memory_space<vmem>>, vector<16x128xf32>
    tpu.vector_store %arg10[%c0_4, %c0_5], %5 {strides = array<i32>} : memref<16x128xf32, #tpu.memory_space<vmem>>, vector<16x128xf32>,
    %c0_6 = arith.constant 0 : index
    %c0_7 = arith.constant 0 : index
    %7 = vector.load %arg11[%c0_6, %c0_7] : memref<16x128xf32, #tpu.memory_space<vmem>>, vector<16x128xf32>
    %c0_8 = arith.constant 0 : index
    %c0_9 = arith.constant 0 : index
    %8 = vector.load %arg12[%c0_8, %c0_9] : memref<16x128xf32, #tpu.memory_space<vmem>>, vector<16x128xf32>
    %c0_10 = arith.constant 0 : index
    %c0_11 = arith.constant 0 : index
    %9 = vector.load %arg13[%c0_10, %c0_11] : memref<16x128xf32, #tpu.memory_space<vmem>>, vector<16x128xf32>
    %c0_i32_12 = arith.constant 0 : i32
    %c16_i32 = arith.constant 16 : i32
    %10 = arith.muli %c0_i32_12, %c16_i32 : i32
    %11 = tpu.assume_multiple %10, 16 : i32
    %12 = arith.truncf %7 : vector<16x128xf32> to vector<16x128xbf16>
    %c0_13 = arith.constant 0 : index
    %c0_14 = arith.constant 0 : index
    %13 = vector.load %arg5[%c0_13, %c0_14] : memref<128x128xbf16, #tpu.memory_space<vmem>>, vector<128x128xbf16>
    %cst_15 = arith.constant dense<0.000000e+00> : vector<16x128xf32>
    %14 = tpu.matmul %12, %13, %cst_15 {dimension_numbers = #tpu.dot_dimension_numbers<[1], [0], [0], [1], [0, 0, 1, 1], [], []>} : vector<16x128xbf16>, vector<128x128xbf16>, vector<16x128xf32> -> vector<16x128xf32>
    %15 = arith.index_cast %11 : i32 to index
    %c0_16 = arith.constant 0 : index
    %16 = vector.load %arg10[%15, %c0_16] : memref<16x128xf32, #tpu.memory_space<vmem>>, vector<16x128xf32>
    %17 = arith.addf %14, %16 : vector<16x128xf32>
    %cst_17 = arith.constant 5.000000e-01 : f32
    %18 = vector.broadcast %cst_17 : f32 to vector<16x128xf32>
    %19 = arith.mulf %18, %9 : vector<16x128xf32>
    %20 = arith.subf %17, %19 : vector<16x128xf32>
    %21 = arith.subf %8, %9 : vector<16x128xf32>
    %cst_18 = arith.constant 1.000000e-01 : f32
    %22 = vector.broadcast %cst_18 : f32 to vector<16x128xf32>
    %23 = arith.mulf %22, %21 : vector<16x128xf32>
    %24 = arith.addf %9, %23 : vector<16x128xf32>
    %25 = math.tanh %20 : vector<16x128xf32>
    %26 = arith.index_cast %11 : i32 to index
    %c0_19 = arith.constant 0 : index
    %27 = vector.load %arg7[%26, %c0_19] : memref<16x128xf32, #tpu.memory_space<vmem>>, vector<16x128xf32>
    tpu.vector_store %arg7[%26, %c0_19], %25 {strides = array<i32>} : memref<16x128xf32, #tpu.memory_space<vmem>>, vector<16x128xf32>,
    %28 = arith.index_cast %11 : i32 to index
    %c0_20 = arith.constant 0 : index
    %29 = vector.load %arg8[%28, %c0_20] : memref<16x128xf32, #tpu.memory_space<vmem>>, vector<16x128xf32>
    tpu.vector_store %arg8[%28, %c0_20], %24 {strides = array<i32>} : memref<16x128xf32, #tpu.memory_space<vmem>>, vector<16x128xf32>,
    %c1_i32 = arith.constant 1 : i32
    %c0_21 = arith.constant 0 : index
    %c0_22 = arith.constant 0 : index
    %30 = vector.load %arg11[%c0_21, %c0_22] : memref<16x128xf32, #tpu.memory_space<vmem>>, vector<16x128xf32>
    tpu.vector_store %arg11[%c0_21, %c0_22], %25 {strides = array<i32>} : memref<16x128xf32, #tpu.memory_space<vmem>>, vector<16x128xf32>,
    %c0_23 = arith.constant 0 : index
    %c0_24 = arith.constant 0 : index
    %31 = vector.load %arg12[%c0_23, %c0_24] : memref<16x128xf32, #tpu.memory_space<vmem>>, vector<16x128xf32>
    tpu.vector_store %arg12[%c0_23, %c0_24], %20 {strides = array<i32>} : memref<16x128xf32, #tpu.memory_space<vmem>>, vector<16x128xf32>,
    %c0_25 = arith.constant 0 : index
    %c0_26 = arith.constant 0 : index
    %32 = vector.load %arg13[%c0_25, %c0_26] : memref<16x128xf32, #tpu.memory_space<vmem>>, vector<16x128xf32>
    tpu.vector_store %arg13[%c0_25, %c0_26], %24 {strides = array<i32>} : memref<16x128xf32, #tpu.memory_space<vmem>>, vector<16x128xf32>,
    %c0_27 = arith.constant 0 : index
    %c0_28 = arith.constant 0 : index
    %33 = vector.load %arg9[%c0_27, %c0_28] : memref<16x128xf32, #tpu.memory_space<vmem>>, vector<16x128xf32>
    tpu.vector_store %arg9[%c0_27, %c0_28], %20 {strides = array<i32>} : memref<16x128xf32, #tpu.memory_space<vmem>>, vector<16x128xf32>,
    return
  }
  func.func @transform_0(%arg0: i32) -> (i32, i32) {
    %c0_i32 = arith.constant 0 : i32
    %c0_i32_0 = arith.constant 0 : i32
    return %arg0, %c0_i32 : i32, i32
  }
  func.func @transform_1(%arg0: i32) -> (i32, i32) {
    %c0_i32 = arith.constant 0 : i32
    %c0_i32_0 = arith.constant 0 : i32
    %c0_i32_1 = arith.constant 0 : i32
    return %c0_i32, %c0_i32_0 : i32, i32
  }
  func.func @transform_2(%arg0: i32) -> (i32, i32) {
    %c0_i32 = arith.constant 0 : i32
    %c0_i32_0 = arith.constant 0 : i32
    %c0_i32_1 = arith.constant 0 : i32
    return %c0_i32, %c0_i32_0 : i32, i32
  }
  func.func @transform_3(%arg0: i32) -> (i32, i32) {
    %c0_i32 = arith.constant 0 : i32
    %c0_i32_0 = arith.constant 0 : i32
    %c0_i32_1 = arith.constant 0 : i32
    return %c0_i32, %c0_i32_0 : i32, i32
  }
  func.func @transform_4(%arg0: i32) -> (i32, i32) {
    %c0_i32 = arith.constant 0 : i32
    %c0_i32_0 = arith.constant 0 : i32
    %c0_i32_1 = arith.constant 0 : i32
    return %c0_i32, %c0_i32_0 : i32, i32
  }
  func.func @transform_5(%arg0: i32) -> (i32, i32) {
    %c0_i32 = arith.constant 0 : i32
    %c0_i32_0 = arith.constant 0 : i32
    %c0_i32_1 = arith.constant 0 : i32
    return %c0_i32, %c0_i32_0 : i32, i32
  }
  func.func @transform_6(%arg0: i32) -> (i32, i32) {
    %c0_i32 = arith.constant 0 : i32
    %c0_i32_0 = arith.constant 0 : i32
    return %arg0, %c0_i32 : i32, i32
  }
  func.func @transform_7(%arg0: i32) -> (i32, i32) {
    %c0_i32 = arith.constant 0 : i32
    %c0_i32_0 = arith.constant 0 : i32
    return %arg0, %c0_i32 : i32, i32
  }
  func.func @transform_8(%arg0: i32) -> (i32, i32) {
    %c0_i32 = arith.constant 0 : i32
    %c0_i32_0 = arith.constant 0 : i32
    %c0_i32_1 = arith.constant 0 : i32
    return %c0_i32, %c0_i32_0 : i32, i32
  }
}

</mosaic_0001>

<llo_original>
// kernel: tpu_custom_call.1
$region0: #{tpu_custom_call.1}
  #allocation0 [shape = 'u32[]', space=smem, size = 0x4, offset = 0x4, fixed_abs, tag = 'smem constant byte address 0x4 - core index']
  #allocation1 [shape = 'u32[144,128]{1,0:T(1,128)}', space=vmem, size = 0x12000, scoped, tag = 'internal scratch']
  #allocation2 [shape = 'f32[16,128]{1,0:T(8,128)}', space=vmem, size = 0x2000, scoped, tag = 'scratch operand']
  #allocation3 [shape = 'f32[16,128]{1,0:T(8,128)}', space=vmem, size = 0x2000, scoped, tag = 'scratch operand']
  #allocation4 [shape = 'f32[16,128]{1,0:T(8,128)}', space=vmem, size = 0x2000, scoped, tag = 'scratch operand']
  #allocation5 [shape = 'f32[16,128]{1,0:T(8,128)}', space=vmem, size = 0x2000, scoped, tag = 'scratch operand']
  %s0 = inlined_call_operand.hbm [shape: bf16[16,128], index: 0, kind: input, shape index: {}]
  %s1 = inlined_call_operand.hbm [shape: f32[16,128], index: 1, kind: input, shape index: {}]
  %s2 = inlined_call_operand.hbm [shape: f32[16,128], index: 2, kind: input, shape index: {}]
  %s3 = inlined_call_operand.hbm [shape: f32[16,128], index: 3, kind: input, shape index: {}]
  %s4 = inlined_call_operand.hbm [shape: bf16[128,128], index: 4, kind: input, shape index: {}]
  %s5 = inlined_call_operand.hbm [shape: bf16[128,128], index: 5, kind: input, shape index: {}]
  %s6 = inlined_call_operand.hbm [shape: f32[16,128], index: 6, kind: output, shape index: {0}]
  %s7 = inlined_call_operand.hbm [shape: f32[16,128], index: 7, kind: output, shape index: {1}]
  %s8 = inlined_call_operand.hbm [shape: f32[16,128], index: 8, kind: output, shape index: {2}]
  %9 = xla_tuple %s6, %s7, %s8
  %s10 = sld [smem:[#allocation0]]
  $region78: #{tpu_custom_call.1} parent=0
    _
  %s12 = ssub.s32 1, %s10
  %s13 = scalar_select 0, %s12, %s10
  $region1: #{tpu_custom_call.1} parent=0
    #allocation6 [shape = 'u8[4096]{0}', space=vmem, size = 0x1000, scoped, tag = 'input window, operand 0, single buffered']
    #allocation7 [shape = 's32[1]{0}', space=sflag, size = 0x4, scoped, tag = 'scoped memory for tpu_custom_call.1']
    #allocation8 [shape = 's32[1]{0}', space=sflag, size = 0x4, scoped, tag = 'scoped memory for tpu_custom_call.1']
    #allocation9 [shape = 'u8[8192]{0}', space=vmem, size = 0x2000, scoped, tag = 'input window, operand 1, single buffered']
    #allocation10 [shape = 's32[1]{0}', space=sflag, size = 0x4, scoped, tag = 'scoped memory for tpu_custom_call.1']
    #allocation11 [shape = 'u8[8192]{0}', space=vmem, size = 0x2000, scoped, tag = 'input window, operand 2, single buffered']
    #allocation12 [shape = 'u8[8192]{0}', space=vmem, size = 0x2000, scoped, tag = 'input window, operand 3, single buffered']
    #allocation13 [shape = 's32[1]{0}', space=sflag, size = 0x4, scoped, tag = 'scoped memory for tpu_custom_call.1']
    #allocation14 [shape = 'u8[32768]{0}', space=vmem, size = 0x8000, scoped, tag = 'input window, operand 4, single buffered']
    #allocation15 [shape = 'u8[32768]{0}', space=vmem, size = 0x8000, scoped, tag = 'input window, operand 5, single buffered']
    #allocation16 [shape = 's32[1]{0}', space=sflag, size = 0x4, scoped, tag = 'scoped memory for tpu_custom_call.1']
    #allocation17 [shape = 'u8[8192]{0}', space=vmem, size = 0x2000, scoped, tag = 'output window, operand 0, single buffered']
    #allocation18 [shape = 'u8[8192]{0}', space=vmem, size = 0x2000, scoped, tag = 'output window, operand 1, single buffered']
    #allocation19 [shape = 's32[1]{0}', space=sflag, size = 0x4, scoped, tag = 'scoped memory for tpu_custom_call.1']
    #allocation20 [shape = 'u8[8192]{0}', space=vmem, size = 0x2000, scoped, tag = 'output window, operand 2, single buffered']
    %14 = vsyncpa [#allocation7], 0
    %15 = vsyncpa [#allocation10], 0
    %16 = vsyncpa [#allocation13], 0
    %17 = vsyncpa [#allocation16], 0
    %18 = vsyncpa [#allocation8], 0
    %19 = vsyncpa [#allocation19], 0
    // Predicated region
    $region2: #{tpu_custom_call.1} parent=1 // pred_check
      _
    $region3: #{tpu_custom_call.1} parent=1 // pred_check_branch
      %21 = sbr.rel (0) target = $region5
    $region4: #{tpu_custom_call.1} parent=1 // pred_region
      %s23 = ssub.s32 128, 128
      %24 = vsyncadd [#allocation7], %s23
      %s25 = sshll.u32 [#allocation6], 4
      %s26 = int_to_ptr.vmem [resolvable:$true] %s25
      %31 = dma.hbm_to_vmem [thread:$0]  %s0, 128, %s26, [#allocation7], 64, 64, 4
    $region5: #{tpu_custom_call.1} parent=1 // pred_fallthru
      _
    // Predicated region
    $region6: #{tpu_custom_call.1} parent=1 // pred_check
      _
    $region7: #{tpu_custom_call.1} parent=1 // pred_check_branch
      %33 = sbr.rel (0) target = $region9
    $region8: #{tpu_custom_call.1} parent=1 // pred_region
      %s35 = ssub.s32 256, 256
      %36 = vsyncadd [#allocation10], %s35
      %s37 = sshll.u32 [#allocation9], 4
      %s38 = int_to_ptr.vmem [resolvable:$true] %s37
      %43 = dma.hbm_to_vmem [thread:$0]  %s1, 256, %s38, [#allocation10], 128, 128, 8
    $region9: #{tpu_custom_call.1} parent=1 // pred_fallthru
      _
    // Predicated region
    $region10: #{tpu_custom_call.1} parent=1 // pred_check
      _
    $region11: #{tpu_custom_call.1} parent=1 // pred_check_branch
      %45 = sbr.rel (0) target = $region13
    $region12: #{tpu_custom_call.1} parent=1 // pred_region
      %s47 = ssub.s32 256, 256
      %48 = vsyncadd [#allocation10], %s47
      %s49 = sshll.u32 [#allocation11], 4
      %s50 = int_to_ptr.vmem [resolvable:$true] %s49
      %55 = dma.hbm_to_vmem [thread:$0]  %s2, 256, %s50, [#allocation10], 128, 128, 8
    $region13: #{tpu_custom_call.1} parent=1 // pred_fallthru
      _
    // Predicated region
    $region14: #{tpu_custom_call.1} parent=1 // pred_check
      _
    $region15: #{tpu_custom_call.1} parent=1 // pred_check_branch
      %57 = sbr.rel (0) target = $region17
    $region16: #{tpu_custom_call.1} parent=1 // pred_region
      %s59 = ssub.s32 256, 256
      %60 = vsyncadd [#allocation13], %s59
      %s61 = sshll.u32 [#allocation12], 4
      %s62 = int_to_ptr.vmem [resolvable:$true] %s61
      %67 = dma.hbm_to_vmem [thread:$0]  %s3, 256, %s62, [#allocation13], 128, 128, 8
    $region17: #{tpu_custom_call.1} parent=1 // pred_fallthru
      _
    // Predicated region
    $region18: #{tpu_custom_call.1} parent=1 // pred_check
      _
    $region19: #{tpu_custom_call.1} parent=1 // pred_check_branch
      %69 = sbr.rel (0) target = $region21
    $region20: #{tpu_custom_call.1} parent=1 // pred_region
      %s71 = ssub.s32 1024, 1024
      %72 = vsyncadd [#allocation13], %s71
      %s73 = sshll.u32 [#allocation14], 4
      %s74 = int_to_ptr.vmem [resolvable:$true] %s73
      %79 = dma.hbm_to_vmem [thread:$0]  %s4, 1024, %s74, [#allocation13], 64, 64, 4
    $region21: #{tpu_custom_call.1} parent=1 // pred_fallthru
      _
    // Predicated region
    $region22: #{tpu_custom_call.1} parent=1 // pred_check
      _
    $region23: #{tpu_custom_call.1} parent=1 // pred_check_branch
      %81 = sbr.rel (0) target = $region25
    $region24: #{tpu_custom_call.1} parent=1 // pred_region
      %s83 = ssub.s32 1024, 1024
      %84 = vsyncadd [#allocation16], %s83
      %s85 = sshll.u32 [#allocation15], 4
      %s86 = int_to_ptr.vmem [resolvable:$true] %s85
      %91 = dma.hbm_to_vmem [thread:$0]  %s5, 1024, %s86, [#allocation16], 64, 64, 4
    $region25: #{tpu_custom_call.1} parent=1 // pred_fallthru
      _
    // Predicated region
    $region26: #{tpu_custom_call.1} parent=1 // pred_check
      _
    $region27: #{tpu_custom_call.1} parent=1 // pred_check_branch
      %93 = sbr.rel (0) target = $region29
    $region28: #{tpu_custom_call.1} parent=1 // pred_region
      %94 = dma.done [#allocation7], 128
    $region29: #{tpu_custom_call.1} parent=1 // pred_fallthru
      _
    // Predicated region
    $region30: #{tpu_custom_call.1} parent=1 // pred_check
      _
    $region31: #{tpu_custom_call.1} parent=1 // pred_check_branch
      %96 = sbr.rel (0) target = $region33
    $region32: #{tpu_custom_call.1} parent=1 // pred_region
      %97 = dma.done [#allocation10], 256
    $region33: #{tpu_custom_call.1} parent=1 // pred_fallthru
      _
    // Predicated region
    $region34: #{tpu_custom_call.1} parent=1 // pred_check
      _
    $region35: #{tpu_custom_call.1} parent=1 // pred_check_branch
      %99 = sbr.rel (0) target = $region37
    $region36: #{tpu_custom_call.1} parent=1 // pred_region
      %100 = dma.done [#allocation10], 256
    $region37: #{tpu_custom_call.1} parent=1 // pred_fallthru
      _
    // Predicated region
    $region38: #{tpu_custom_call.1} parent=1 // pred_check
      _
    $region39: #{tpu_custom_call.1} parent=1 // pred_check_branch
      %102 = sbr.rel (0) target = $region41
    $region40: #{tpu_custom_call.1} parent=1 // pred_region
      %103 = dma.done [#allocation13], 256
    $region41: #{tpu_custom_call.1} parent=1 // pred_fallthru
      _
    // Predicated region
    $region42: #{tpu_custom_call.1} parent=1 // pred_check
      _
    $region43: #{tpu_custom_call.1} parent=1 // pred_check_branch
      %105 = sbr.rel (0) target = $region45
    $region44: #{tpu_custom_call.1} parent=1 // pred_region
      %106 = dma.done [#allocation13], 1024
    $region45: #{tpu_custom_call.1} parent=1 // pred_fallthru
      _
    // Predicated region
    $region46: #{tpu_custom_call.1} parent=1 // pred_check
      _
    $region47: #{tpu_custom_call.1} parent=1 // pred_check_branch
      %108 = sbr.rel (0) target = $region49
    $region48: #{tpu_custom_call.1} parent=1 // pred_region
      %109 = dma.done [#allocation16], 1024
    $region49: #{tpu_custom_call.1} parent=1 // pred_fallthru
      _
    %p111 = scmp.eq.s32.totalorder 0, 0
    // Predicated region
    $region50: #{tpu_custom_call.1} parent=1 // pred_check
      %p112 = pneg %p111
    $region51: #{tpu_custom_call.1} parent=1 // pred_check_branch
      %114 = sbr.rel (%p112) target = $region53
    $region52: #{tpu_custom_call.1} parent=1 // pred_region
      %v115 = vld [vmem:[#allocation9] sm:$0xff]
      %v116 = vld [vmem:[#allocation9 + $0x8] sm:$0xff]
      %117 = vst [vmem:[#allocation3] sm:$0xff] %v115
      %118 = vst [vmem:[#allocation3 + $0x8] sm:$0xff] %v116
      %v119 = vld [vmem:[#allocation11] sm:$0xff]
      %v120 = vld [vmem:[#allocation11 + $0x8] sm:$0xff]
      %121 = vst [vmem:[#allocation4] sm:$0xff] %v119
      %122 = vst [vmem:[#allocation4 + $0x8] sm:$0xff] %v120
      %v123 = vld [vmem:[#allocation12] sm:$0xff]
      %v124 = vld [vmem:[#allocation12 + $0x8] sm:$0xff]
      %125 = vst [vmem:[#allocation5] sm:$0xff] %v123
      %126 = vst [vmem:[#allocation5 + $0x8] sm:$0xff] %v124
    $region53: #{tpu_custom_call.1} parent=1 // pred_fallthru
      _
    %v127 = vld [vmem:[#allocation6] sm:$0xf]
    %v128 = vld [vmem:[#allocation6 + $0x4] sm:$0xf]
    %v129 = vld [vmem:[#allocation15] sm:$0xf]
    %v130 = vld [vmem:[#allocation15 + $0x4] sm:$0xf]
    %v131 = vld [vmem:[#allocation15 + $0x8] sm:$0xf]
    %v132 = vld [vmem:[#allocation15 + $0xc] sm:$0xf]
    %v133 = vld [vmem:[#allocation15 + $0x10] sm:$0xf]
    %v134 = vld [vmem:[#allocation15 + $0x14] sm:$0xf]
    %v135 = vld [vmem:[#allocation15 + $0x18] sm:$0xf]
    %v136 = vld [vmem:[#allocation15 + $0x1c] sm:$0xf]
    %v137 = vld [vmem:[#allocation15 + $0x20] sm:$0xf]
    %v138 = vld [vmem:[#allocation15 + $0x24] sm:$0xf]
    %v139 = vld [vmem:[#allocation15 + $0x28] sm:$0xf]
    %v140 = vld [vmem:[#allocation15 + $0x2c] sm:$0xf]
    %v141 = vld [vmem:[#allocation15 + $0x30] sm:$0xf]
    %v142 = vld [vmem:[#allocation15 + $0x34] sm:$0xf]
    %v143 = vld [vmem:[#allocation15 + $0x38] sm:$0xf]
    %v144 = vld [vmem:[#allocation15 + $0x3c] sm:$0xf]
    %v147 = vunpack.c.l.b16 %v127
    %v148 = vunpack.c.l.b16 %v128
    %v149 = vpack.c.b16 %v148, %v147
    %v167 = vunpack.c.l.b16 %v129
    %v168 = vunpack.c.l.b16 %v130
    %v169 = vunpack.c.l.b16 %v131
    %v170 = vunpack.c.l.b16 %v132
    %v171 = vunpack.c.l.b16 %v133
    %v172 = vunpack.c.l.b16 %v134
    %v173 = vunpack.c.l.b16 %v135
    %v174 = vunpack.c.l.b16 %v136
    %v175 = vunpack.c.l.b16 %v137
    %v176 = vunpack.c.l.b16 %v138
    %v177 = vunpack.c.l.b16 %v139
    %v178 = vunpack.c.l.b16 %v140
    %v179 = vunpack.c.l.b16 %v141
    %v180 = vunpack.c.l.b16 %v142
    %v181 = vunpack.c.l.b16 %v143
    %v182 = vunpack.c.l.b16 %v144
    %v183 = vpack.c.b16 %v168, %v167
    %v184 = vpack.c.b16 %v170, %v169
    %v185 = vpack.c.b16 %v172, %v171
    %v186 = vpack.c.b16 %v174, %v173
    %v187 = vpack.c.b16 %v176, %v175
    %v188 = vpack.c.b16 %v178, %v177
    %v189 = vpack.c.b16 %v180, %v179
    %v190 = vpack.c.b16 %v182, %v181
    %199 = vmatprep.subr.bf16.mxu0 0
    %200 = vmatpush1.bf16.msra.mxu0 %v183
    %201 = vmatprep.subr.bf16.mxu0 0
    %202 = vmatpush1.bf16.msra.mxu0 %v184
    %203 = vmatprep.subr.bf16.mxu0 0
    %204 = vmatpush1.bf16.msra.mxu0 %v185
    %205 = vmatprep.subr.bf16.mxu0 0
    %206 = vmatpush1.bf16.msra.mxu0 %v186
    %207 = vmatprep.subr.bf16.mxu0 0
    %208 = vmatpush1.bf16.msra.mxu0 %v187
    %209 = vmatprep.subr.bf16.mxu0 0
    %210 = vmatpush1.bf16.msra.mxu0 %v188
    %211 = vmatprep.subr.bf16.mxu0 0
    %212 = vmatpush1.bf16.msra.mxu0 %v189
    %213 = vmatprep.subr.bf16.mxu0 0
    %214 = vmatpush1.bf16.msra.mxu0 %v190
    %215 = vmatprep.subr.bf16.mxu0 0
    %216 = vmatpush1.bf16.msra.mxu0 0
    %217 = vmatprep.subr.bf16.mxu0 0
    %218 = vmatpush1.bf16.msra.mxu0 0
    %219 = vmatprep.subr.bf16.mxu0 0
    %220 = vmatpush1.bf16.msra.mxu0 0
    %221 = vmatprep.subr.bf16.mxu0 0
    %222 = vmatpush1.bf16.msra.mxu0 0
    %223 = vmatprep.subr.bf16.mxu0 0
    %224 = vmatpush1.bf16.msra.mxu0 0
    %225 = vmatprep.subr.bf16.mxu0 0
    %226 = vmatpush1.bf16.msra.mxu0 0
    %227 = vmatprep.subr.bf16.mxu0 0
    %228 = vmatpush1.bf16.msra.mxu0 0
    %229 = vmatprep.subr.bf16.mxu0 0
    %230 = vmatpush1.bf16.msra.mxu0 0
    %231 = vmatprep.mubr.bf16.mxu0 0
    %232 = vmatmul.mubr.bf16.gmra.mrb[0].mxu0 %v149
    %v233 = vpop.f32.mrb[0].mxu0
    %v234 = vadd.f32 0.0, %v233
    %v235 = vpop.f32.mrb[0].mxu0
    %v236 = vpop.f32.mrb[0].mxu0
    %v237 = vadd.f32 0.0, %v236
    %v238 = vpop.f32.mrb[0].mxu0
    %239 = vdwg.mxu0
    %240 = vst [vmem:[#allocation2] sm:$0xff] %v234
    %241 = vst [vmem:[#allocation2 + $0x8] sm:$0xff] %v237
    %v242 = vld [vmem:[#allocation3] sm:$0xff]
    %v243 = vld [vmem:[#allocation3 + $0x8] sm:$0xff]
    %v244 = vld [vmem:[#allocation4] sm:$0xff]
    %v245 = vld [vmem:[#allocation4 + $0x8] sm:$0xff]
    %v246 = vld [vmem:[#allocation5] sm:$0xff]
    %v247 = vld [vmem:[#allocation5 + $0x8] sm:$0xff]
    %v248 = vpack.c.bf16 %v243, %v242
    %v249 = vld [vmem:[#allocation14] sm:$0xf]
    %v250 = vld [vmem:[#allocation14 + $0x4] sm:$0xf]
    %v251 = vld [vmem:[#allocation14 + $0x8] sm:$0xf]
    %v252 = vld [vmem:[#allocation14 + $0xc] sm:$0xf]
    %v253 = vld [vmem:[#allocation14 + $0x10] sm:$0xf]
    %v254 = vld [vmem:[#allocation14 + $0x14] sm:$0xf]
    %v255 = vld [vmem:[#allocation14 + $0x18] sm:$0xf]
    %v256 = vld [vmem:[#allocation14 + $0x1c] sm:$0xf]
    %v257 = vld [vmem:[#allocation14 + $0x20] sm:$0xf]
    %v258 = vld [vmem:[#allocation14 + $0x24] sm:$0xf]
    %v259 = vld [vmem:[#allocation14 + $0x28] sm:$0xf]
    %v260 = vld [vmem:[#allocation14 + $0x2c] sm:$0xf]
    %v261 = vld [vmem:[#allocation14 + $0x30] sm:$0xf]
    %v262 = vld [vmem:[#allocation14 + $0x34] sm:$0xf]
    %v263 = vld [vmem:[#allocation14 + $0x38] sm:$0xf]
    %v264 = vld [vmem:[#allocation14 + $0x3c] sm:$0xf]
    %v265 = vld [vmem:[#allocation2] sm:$0xff]
    %v266 = vld [vmem:[#allocation2 + $0x8] sm:$0xff]
    %v283 = vunpack.c.l.b16 %v249
    %v284 = vunpack.c.l.b16 %v250
    %v285 = vunpack.c.l.b16 %v251
    %v286 = vunpack.c.l.b16 %v252
    %v287 = vunpack.c.l.b16 %v253
    %v288 = vunpack.c.l.b16 %v254
    %v289 = vunpack.c.l.b16 %v255
    %v290 = vunpack.c.l.b16 %v256
    %v291 = vunpack.c.l.b16 %v257
    %v292 = vunpack.c.l.b16 %v258
    %v293 = vunpack.c.l.b16 %v259
    %v294 = vunpack.c.l.b16 %v260
    %v295 = vunpack.c.l.b16 %v261
    %v296 = vunpack.c.l.b16 %v262
    %v297 = vunpack.c.l.b16 %v263
    %v298 = vunpack.c.l.b16 %v264
    %v299 = vpack.c.b16 %v284, %v283
    %v300 = vpack.c.b16 %v286, %v285
    %v301 = vpack.c.b16 %v288, %v287
    %v302 = vpack.c.b16 %v290, %v289
    %v303 = vpack.c.b16 %v292, %v291
    %v304 = vpack.c.b16 %v294, %v293
    %v305 = vpack.c.b16 %v296, %v295
    %v306 = vpack.c.b16 %v298, %v297
    %315 = vmatprep.subr.bf16.mxu0 0
    %316 = vmatpush1.bf16.msra.mxu0 %v299
    %317 = vmatprep.subr.bf16.mxu0 0
    %318 = vmatpush1.bf16.msra.mxu0 %v300
    %319 = vmatprep.subr.bf16.mxu0 0
    %320 = vmatpush1.bf16.msra.mxu0 %v301
    %321 = vmatprep.subr.bf16.mxu0 0
    %322 = vmatpush1.bf16.msra.mxu0 %v302
    %323 = vmatprep.subr.bf16.mxu0 0
    %324 = vmatpush1.bf16.msra.mxu0 %v303
    %325 = vmatprep.subr.bf16.mxu0 0
    %326 = vmatpush1.bf16.msra.mxu0 %v304
    %327 = vmatprep.subr.bf16.mxu0 0
    %328 = vmatpush1.bf16.msra.mxu0 %v305
    %329 = vmatprep.subr.bf16.mxu0 0
    %330 = vmatpush1.bf16.msra.mxu0 %v306
    %331 = vmatprep.subr.bf16.mxu0 0
    %332 = vmatpush1.bf16.msra.mxu0 0
    %333 = vmatprep.subr.bf16.mxu0 0
    %334 = vmatpush1.bf16.msra.mxu0 0
    %335 = vmatprep.subr.bf16.mxu0 0
    %336 = vmatpush1.bf16.msra.mxu0 0
    %337 = vmatprep.subr.bf16.mxu0 0
    %338 = vmatpush1.bf16.msra.mxu0 0
    %339 = vmatprep.subr.bf16.mxu0 0
    %340 = vmatpush1.bf16.msra.mxu0 0
    %341 = vmatprep.subr.bf16.mxu0 0
    %342 = vmatpush1.bf16.msra.mxu0 0
    %343 = vmatprep.subr.bf16.mxu0 0
    %344 = vmatpush1.bf16.msra.mxu0 0
    %345 = vmatprep.subr.bf16.mxu0 0
    %346 = vmatpush1.bf16.msra.mxu0 0
    %347 = vmatprep.mubr.bf16.mxu0 0
    %348 = vmatmul.mubr.bf16.gmra.mrb[0].mxu0 %v248
    %v349 = vpop.f32.mrb[0].mxu0
    %v350 = vadd.f32 %v265, %v349
    %v351 = vpop.f32.mrb[0].mxu0
    %v352 = vpop.f32.mrb[0].mxu0
    %v353 = vadd.f32 %v266, %v352
    %v354 = vpop.f32.mrb[0].mxu0
    %355 = vdwg.mxu0
    %v356 = vmul.f32 %v246, 0.5
    %v357 = vmul.f32 %v247, 0.5
    %v358 = vsub.f32 %v350, %v356
    %v359 = vsub.f32 %v353, %v357
    %v360 = vsub.f32 %v244, %v246
    %v361 = vsub.f32 %v245, %v247
    %v362 = vmul.f32 %v360, 0.1
    %v363 = vmul.f32 %v361, 0.1
    %v364 = vadd.f32 %v246, %v362
    %v365 = vadd.f32 %v247, %v363
    %v366 = vtanh.pop %v358
    %v367 = vtanh.pop %v359
    %368 = vst [vmem:[#allocation17] sm:$0xff] %v366
    %369 = vst [vmem:[#allocation17 + $0x8] sm:$0xff] %v367
    %370 = vst [vmem:[#allocation18] sm:$0xff] %v364
    %371 = vst [vmem:[#allocation18 + $0x8] sm:$0xff] %v365
    %372 = vst [vmem:[#allocation3] sm:$0xff] %v366
    %373 = vst [vmem:[#allocation3 + $0x8] sm:$0xff] %v367
    %374 = vst [vmem:[#allocation4] sm:$0xff] %v358
    %375 = vst [vmem:[#allocation4 + $0x8] sm:$0xff] %v359
    %376 = vst [vmem:[#allocation5] sm:$0xff] %v364
    %377 = vst [vmem:[#allocation5 + $0x8] sm:$0xff] %v365
    %378 = vst [vmem:[#allocation20] sm:$0xff] %v358
    %379 = vst [vmem:[#allocation20 + $0x8] sm:$0xff] %v359
    // Predicated region
    $region54: #{tpu_custom_call.1} parent=1 // pred_check
      _
    $region55: #{tpu_custom_call.1} parent=1 // pred_check_branch
      %381 = sbr.rel (0) target = $region57
    $region56: #{tpu_custom_call.1} parent=1 // pred_region
      %s383 = ssub.s32 256, 256
      %384 = vsyncadd [#allocation8], %s383
      %s385 = sshll.u32 [#allocation17], 4
      %s386 = int_to_ptr.vmem [resolvable:$true] %s385
      %391 = dma.vmem_to_hbm [thread:$0]  %s386, 256, %s6, [#allocation8], 128, 128, 8
    $region57: #{tpu_custom_call.1} parent=1 // pred_fallthru
      _
    // Predicated region
    $region58: #{tpu_custom_call.1} parent=1 // pred_check
      _
    $region59: #{tpu_custom_call.1} parent=1 // pred_check_branch
      %393 = sbr.rel (0) target = $region61
    $region60: #{tpu_custom_call.1} parent=1 // pred_region
      %s395 = ssub.s32 256, 256
      %396 = vsyncadd [#allocation19], %s395
      %s397 = sshll.u32 [#allocation18], 4
      %s398 = int_to_ptr.vmem [resolvable:$true] %s397
      %403 = dma.vmem_to_hbm [thread:$0]  %s398, 256, %s7, [#allocation19], 128, 128, 8
    $region61: #{tpu_custom_call.1} parent=1 // pred_fallthru
      _
    // Predicated region
    $region62: #{tpu_custom_call.1} parent=1 // pred_check
      _
    $region63: #{tpu_custom_call.1} parent=1 // pred_check_branch
      %405 = sbr.rel (0) target = $region65
    $region64: #{tpu_custom_call.1} parent=1 // pred_region
      %s407 = ssub.s32 256, 256
      %408 = vsyncadd [#allocation19], %s407
      %s409 = sshll.u32 [#allocation20], 4
      %s410 = int_to_ptr.vmem [resolvable:$true] %s409
      %415 = dma.vmem_to_hbm [thread:$0]  %s410, 256, %s8, [#allocation19], 128, 128, 8
    $region65: #{tpu_custom_call.1} parent=1 // pred_fallthru
      _
    // Predicated region
    $region66: #{tpu_custom_call.1} parent=1 // pred_check
      _
    $region67: #{tpu_custom_call.1} parent=1 // pred_check_branch
      %417 = sbr.rel (0) target = $region69
    $region68: #{tpu_custom_call.1} parent=1 // pred_region
      %418 = dma.done [#allocation8], 256
    $region69: #{tpu_custom_call.1} parent=1 // pred_fallthru
      _
    // Predicated region
    $region70: #{tpu_custom_call.1} parent=1 // pred_check
      _
    $region71: #{tpu_custom_call.1} parent=1 // pred_check_branch
      %420 = sbr.rel (0) target = $region73
    $region72: #{tpu_custom_call.1} parent=1 // pred_region
      %421 = dma.done [#allocation19], 256
    $region73: #{tpu_custom_call.1} parent=1 // pred_fallthru
      _
    // Predicated region
    $region74: #{tpu_custom_call.1} parent=1 // pred_check
      _
    $region75: #{tpu_custom_call.1} parent=1 // pred_check_branch
      %423 = sbr.rel (0) target = $region77
    $region76: #{tpu_custom_call.1} parent=1 // pred_region
      %424 = dma.done [#allocation19], 256
    $region77: #{tpu_custom_call.1} parent=1 // pred_fallthru
      _
    %425 = vsyncpa [#allocation7], 1
    %426 = vsyncpa [#allocation10], 1
    %427 = vsyncpa [#allocation13], 1
    %428 = vsyncpa [#allocation16], 1
    %429 = vsyncpa [#allocation8], 1
    %430 = vsyncpa [#allocation19], 1

</llo_original>
